<compile_context>
chip_gen: v7x
topology: tpu7x:2x2x1
jax: 0.10.0
libtpu: 0.0.40
codegen_flags: <defaults>
</compile_context>

<pallas_src>
import functools

import jax
import jax.numpy as jnp
from jax import lax
from jax.experimental import pallas as pl
from jax.experimental.pallas import tpu as pltpu

_LANES = 128


def _round_up(a: int, b: int) -> int:
    return (a + b - 1) // b * b


def _refined_reciprocal(s):
    # EUP approx reciprocal (near-free bundle slot) + 2 Newton-Raphson steps:
    # a few VPU mults restore ~f32 accuracy regardless of how crude vrcp is.
    r = pl.reciprocal(s, approx=True)
    r = r * (2.0 - s * r)
    r = r * (2.0 - s * r)
    return r


def _focal_factor(p, gamma: float):
    if gamma == 0.0:
        return None                                  # focal term is 1 -> skip entirely
    base = jnp.maximum(1.0 - p, 0.0)                 # clamp (p may exceed 1 by ~1 ulp)
    if float(gamma).is_integer() and 1.0 <= gamma <= 4.0:
        f = base
        for _ in range(int(gamma) - 1):              # integer gamma: VPU multiplies
            f = f * base
        return f
    return base ** gamma                             # general gamma: pow (EUP)


def _soft_focal_kernel(*refs, softmax: bool, gamma: float, group: int,
                       n_valid_rows: int, pad_x: float, needs_mask: bool):
    """Processes one (row_block, W) tile of the lane-packed / wide layout.

    group > 1 : W == 128; each 128-lane row holds `group` logical rows of
                Cp = 128 // group classes.  Per-logical-row exp-sums come from a
                block-diagonal MXU matmul; the exp() stabiliser is the per-vreg-row
                max (exact via shift invariance of log-softmax).
    group == 1: W == Cp (multiple of 128); one logical row per physical row,
                standard keepdims reductions along the lane axis.
    """
    use_smat = softmax and group > 1
    if use_smat:
        x_ref, y_ref, a_ref, smat_ref, o_ref, acc_ref = refs
    else:
        x_ref, y_ref, a_ref, o_ref, acc_ref = refs
        smat_ref = None

    p_id = pl.program_id(0)
    j_id = pl.program_id(1)
    n_j = pl.num_programs(1)

    @pl.when(j_id == 0)
    def _():
        acc_ref[...] = jnp.zeros_like(acc_ref)

    shape = x_ref.shape                               # (row_block, W)
    row_block = shape[0]

    if needs_mask:
        # Blocks that hang over the end of the array (cdiv grid / clamped duplicate
        # blocks for the 2-core split) deliver unspecified or duplicated data ->
        # replace it with safe pad values BEFORE any transcendental so those
        # elements contribute exactly 0 (y == 0).
        block_idx = p_id * n_j + j_id
        rows = block_idx * row_block + lax.broadcasted_iota(jnp.int32, shape, 0)
        valid = rows < n_valid_rows
        x = jnp.where(valid, x_ref[...].astype(jnp.float32), pad_x)
        y = jnp.where(valid, y_ref[...].astype(jnp.float32), 0.0)
    else:
        # Fast path: grid exactly tiles the (host-padded) rows; host-side padding
        # already carries safe values, so no per-element masking is required.
        x = x_ref[...].astype(jnp.float32)
        y = y_ref[...].astype(jnp.float32)
    alpha = a_ref[...].astype(jnp.float32)            # (1, W), VMEM resident

    if softmax:
        m = jnp.max(x, axis=-1, keepdims=True)        # per-vreg-row stabiliser
        z = x - m
        e = jnp.exp(z)
        if group > 1:
            # per-logical-row sum of exp, already broadcast to every lane of the
            # group, via one MXU matmul with the block-diagonal 0/1 matrix.
            s = jnp.dot(e, smat_ref[...],
                        preferred_element_type=jnp.float32,
                        precision=jax.lax.Precision.HIGHEST)
        else:
            s = jnp.sum(e, axis=-1, keepdims=True)
        s = jnp.maximum(s, 1e-30)                     # fully-padded groups stay finite
        log_p = z - jnp.log(s)                        # exact log-softmax, never -inf*0
        p = jnp.minimum(e * _refined_reciprocal(s), 1.0) if gamma != 0.0 else None
    else:
        # p = x is taken as probabilities directly (matches PyTorch semantics;
        # negative or >1 inputs produce NaN in both implementations).
        p = x
        log_p = jnp.log(p)

    loss = (-y) * log_p
    focal = _focal_factor(p, gamma)
    if focal is not None:
        loss = loss * focal
    loss = loss * alpha

    # Pure VPU elementwise accumulation; the single cross-lane reduction happens
    # only once per core, in the final step.
    acc_ref[...] += loss

    @pl.when(j_id == n_j - 1)
    def _():
        partial = jnp.sum(acc_ref[...])
        o_ref[...] = jnp.broadcast_to(partial, o_ref.shape)


def soft_focal_loss_for_sequence(x, y, alpha=None, gamma: float = 0.0,
                                 softmax: bool = True, aggregation: str = "mean",
                                 row_block=None):
    """Pallas TPU forward of SoftFocalLossForSequence.

    x, y: (..., C) logits / soft labels (e.g. (B, T, C)), any float dtype
          (kept in native dtype for the DMA, upcast to f32 inside the kernel).
    Returns the scalar mean over all leading dims of
        sum_c  -alpha_c * y_c * log(p_c) * (1 - p_c)**gamma.
    """
    if aggregation != "mean":
        # TODO(synk): 'sum' / per-timestep aggregation variants of SoftFocalLoss.
        raise NotImplementedError("only aggregation='mean' is implemented")

    *lead, C = x.shape
    N = 1
    for d in lead:
        N *= d
    assert y.shape == x.shape

    if alpha is None:
        alpha_arr = jnp.ones((C,), jnp.float32)
    else:
        alpha_arr = jnp.asarray(alpha, jnp.float32).reshape(C)

    # Class-axis padding target: a divisor of 128 when C is small (lane packing),
    # a multiple of 128 otherwise.  TODO(synk): stream/online-softmax the class
    # axis for vocab-scale C instead of keeping it as one block.
    if C % _LANES == 0:
        Cp = C
    elif C < _LANES:
        Cp = pl.next_power_of_2(C)
    else:
        Cp = _round_up(C, _LANES)
    group = _LANES // Cp if Cp < _LANES else 1

    # Safe padding values: padded classes/rows carry y == 0 and a logit/probability
    # that keeps every intermediate finite, so they contribute exactly 0.
    pad_x = float(jnp.finfo(x.dtype).min) / 2.0 if softmax else 0.5

    xf = x.reshape(N, C)
    yf = y.reshape(N, C)
    if Cp != C:
        pc = Cp - C
        xf = jnp.pad(xf, ((0, 0), (0, pc)), constant_values=pad_x)
        yf = jnp.pad(yf, ((0, 0), (0, pc)))
        alpha_arr = jnp.pad(alpha_arr, (0, pc))

    smat = None
    if group > 1:
        # Lane packing: (N, Cp) -> flat -> (M, 128); pure reshape, no HBM shuffle
        # (only a tiny tail pad when N*Cp is not a multiple of 8*128).
        flat_x = xf.reshape(-1)
        flat_y = yf.reshape(-1)
        total = N * Cp
        padded_total = _round_up(total, 8 * _LANES)
        if padded_total != total:
            flat_x = jnp.pad(flat_x, (0, padded_total - total), constant_values=pad_x)
            flat_y = jnp.pad(flat_y, (0, padded_total - total))
        M = padded_total // _LANES
        x2 = flat_x.reshape(M, _LANES)
        y2 = flat_y.reshape(M, _LANES)
        W = _LANES
        alpha2 = jnp.tile(alpha_arr, group).reshape(1, _LANES)
        if softmax:
            lane = jnp.arange(_LANES, dtype=jnp.int32)
            smat = (lane[:, None] // Cp == lane[None, :] // Cp).astype(jnp.float32)
    else:
        M = _round_up(N, 8)
        if M != N:
            xf = jnp.pad(xf, ((0, M - N), (0, 0)), constant_values=pad_x)
            yf = jnp.pad(yf, ((0, M - N), (0, 0)))
        x2, y2 = xf, yf
        W = Cp
        alpha2 = alpha_arr.reshape(1, Cp)

    # Row-tile size: ~1 MiB per f32 input block (2 inputs x 2 pipeline buffers +
    # accumulator ~ 5 MiB, comfortably inside the scoped VMEM budget on all gens).
    if row_block is None:
        row_block = max(8, min(2048, (1 << 20) // (W * 4)))
    row_block = _round_up(min(int(row_block), M), 8)

    nblocks = (M + row_block - 1) // row_block
    P = 2 if nblocks > 1 else 1                 # parallel axis for v7x's 2 TensorCores
    J = (nblocks + P - 1) // P

    # Compile-time fast path: the grid exactly tiles the padded rows -> no tail
    # overhang and no clamped duplicate blocks, so skip masking and the clamp.
    needs_mask = (P * J * row_block) != M

    use_smat = softmax and group > 1
    kernel = functools.partial(
        _soft_focal_kernel, softmax=softmax, gamma=float(gamma), group=group,
        n_valid_rows=M, pad_x=pad_x, needs_mask=needs_mask)

    if needs_mask:
        # Block index clamped inside the index_map so the DMA never goes out of
        # range; the kernel masks by the *nominal* row index, so duplicates add 0.
        idx = lambda p, j: (jnp.minimum(p * J + j, nblocks - 1), 0)
    else:
        idx = lambda p, j: (p * J + j, 0)

    in_specs = [
        pl.BlockSpec((row_block, W), idx),
        pl.BlockSpec((row_block, W), idx),
        pl.BlockSpec((1, W), lambda p, j: (0, 0)),
    ]
    inputs = [x2, y2, alpha2]
    if use_smat:
        in_specs.append(pl.BlockSpec((_LANES, _LANES), lambda p, j: (0, 0)))
        inputs.append(smat)

    out = pl.pallas_call(
        kernel,
        out_shape=jax.ShapeDtypeStruct((P, 8, _LANES), jnp.float32),
        grid_spec=pltpu.PrefetchScalarGridSpec(
            num_scalar_prefetch=0,
            grid=(P, J),
            in_specs=in_specs,
            out_specs=pl.BlockSpec((1, 8, _LANES), lambda p, j: (p, 0, 0)),
            scratch_shapes=[pltpu.VMEM((row_block, W), jnp.float32)],
        ),
        compiler_params=pltpu.CompilerParams(
            dimension_semantics=("parallel", "arbitrary"),
            vmem_limit_bytes=32 * 1024 * 1024),
    )(*inputs)

    # Combine per-core partial sums and take the mean over the true row count.
    return jnp.sum(out[:, 0, 0]) / jnp.float32(N)


def _reference(x, y, alpha, gamma, softmax):
    x = x.astype(jnp.float32)
    y = y.astype(jnp.float32)
    p = jax.nn.softmax(x, axis=-1) if softmax else x
    loss = -y * jnp.log(p) * (1.0 - p) ** gamma
    if alpha is not None:
        loss = loss * alpha.reshape((1,) * (x.ndim - 1) + (-1,))
    return jnp.mean(jnp.sum(loss, axis=-1))


if __name__ == "__main__":
    key = jax.random.PRNGKey(0)
    ks = jax.random.split(key, 10)

    def check(name, got, want, rtol=1e-4, atol=1e-5):
        got = jax.block_until_ready(got)
        assert jnp.allclose(got, want, rtol=rtol, atol=atol), \
            (name, float(got), float(want))

    # case 1: tiny packed path (C=4), integer gamma, per-class alpha (fast path)
    B, T, C = 2, 8, 4
    x = jax.random.normal(ks[0], (B, T, C), jnp.float32)
    y = jax.nn.softmax(jax.random.normal(ks[1], (B, T, C), jnp.float32), axis=-1)
    alpha = jnp.linspace(0.5, 1.25, C, dtype=jnp.float32)
    loss = soft_focal_loss_for_sequence(x, y, alpha=alpha, gamma=2.0, softmax=True)
    check("tiny_packed", loss, _reference(x, y, alpha, 2.0, True))

    # case 2: multi-block grid -> exercises the 2-core parallel split, block-index
    # clamping and tail masking (row_block forced small to keep shapes small)
    B, T, C = 2, 600, 4
    x = jax.random.normal(ks[2], (B, T, C), jnp.float32)
    y = jax.nn.softmax(jax.random.normal(ks[3], (B, T, C), jnp.float32), axis=-1)
    loss = soft_focal_loss_for_sequence(x, y, alpha=alpha, gamma=2.0, softmax=True,
                                        row_block=8)
    check("multi_block", loss, _reference(x, y, alpha, 2.0, True))

    # case 3: C not a power of two -> class padding path; gamma=0; alpha=None
    B, T, C = 2, 16, 5
    x = jax.random.normal(ks[4], (B, T, C), jnp.float32)
    y = jax.nn.softmax(jax.random.normal(ks[5], (B, T, C), jnp.float32), axis=-1)
    loss = soft_focal_loss_for_sequence(x, y, alpha=None, gamma=0.0, softmax=True)
    check("gamma0_pad_classes", loss, _reference(x, y, None, 0.0, True))

    # case 4: softmax=False (inputs already probabilities), non-integer gamma
    B, T, C = 2, 8, 4
    p_in = jax.nn.softmax(jax.random.normal(ks[6], (B, T, C), jnp.float32), axis=-1)
    y = jax.nn.softmax(jax.random.normal(ks[7], (B, T, C), jnp.float32), axis=-1)
    loss = soft_focal_loss_for_sequence(p_in, y, alpha=alpha, gamma=1.5, softmax=False)
    check("no_softmax", loss, _reference(p_in, y, alpha, 1.5, False))

    # case 5: wide path (C >= 128 -> one logical row per physical row, fast path)
    B, T, C = 2, 16, 256
    x = jax.random.normal(ks[8], (B, T, C), jnp.float32)
    y = jax.nn.softmax(jax.random.normal(ks[9], (B, T, C), jnp.float32), axis=-1)
    aw = jnp.linspace(0.5, 1.5, C, dtype=jnp.float32)
    loss = soft_focal_loss_for_sequence(x, y, alpha=aw, gamma=2.0, softmax=True)
    check("wide_C", loss, _reference(x, y, aw, 2.0, True))

    # case 6: multi-block grid that exactly tiles the rows -> parallel split with
    # the no-mask / no-clamp fast path (2 blocks of 8 rows each).
    B, T, C = 2, 256, 4        # N*Cp = 2048 = 2 * 8 * 128
    x = jax.random.normal(ks[0], (B, T, C), jnp.float32)
    y = jax.nn.softmax(jax.random.normal(ks[1], (B, T, C), jnp.float32), axis=-1)
    loss = soft_focal_loss_for_sequence(x, y, alpha=alpha, gamma=2.0, softmax=True,
                                        row_block=8)
    check("multi_block_fastpath", loss, _reference(x, y, alpha, 2.0, True))

    print("KERNEL_OK")
</pallas_src>

<mosaic_0001>
module attributes {stable_mosaic.version = 11 : i64} {
  func.func @_soft_focal_kernel(%arg0: i32, %arg1: i32, %arg2: memref<8x128xf32, #tpu.memory_space<vmem>>, %arg3: memref<8x128xf32, #tpu.memory_space<vmem>>, %arg4: memref<1x128xf32, #tpu.memory_space<vmem>>, %arg5: memref<128x128xf32, #tpu.memory_space<vmem>>, %arg6: memref<1x8x128xf32, #tpu.memory_space<vmem>>, %arg7: memref<8x128xf32, #tpu.memory_space<vmem>>) attributes {dimension_semantics = [#tpu.dimension_semantics<parallel>, #tpu.dimension_semantics<arbitrary>], iteration_bounds = array<i64: 1, 1>, scalar_prefetch = 0 : i64, scratch_operands = 1 : i64, tpu.core_type = #tpu.core_type<tc>, window_params = [{transform_indices = @transform_0, window_bounds = array<i64: 8, 128>}, {transform_indices = @transform_1, window_bounds = array<i64: 8, 128>}, {pipeline_mode = #tpu.pipeline_mode<synchronous>, transform_indices = @transform_2, window_bounds = array<i64: 1, 128>}, {pipeline_mode = #tpu.pipeline_mode<synchronous>, transform_indices = @transform_3, window_bounds = array<i64: 128, 128>}, {transform_indices = @transform_4, window_bounds = array<i64: 1, 8, 128>}]} {
    %c0_i32 = arith.constant 0 : i32
    %0 = arith.cmpi eq, %arg1, %c0_i32 : i32
    %1 = arith.extui %0 : i1 to i32
    %c0_i32_0 = arith.constant 0 : i32
    %2 = arith.cmpi ne, %1, %c0_i32_0 : i32
    scf.if %2 {
      %cst_22 = arith.constant 0.000000e+00 : f32
      %46 = vector.broadcast %cst_22 : f32 to vector<8x128xf32>
      %c0_23 = arith.constant 0 : index
      %c0_24 = arith.constant 0 : index
      %47 = vector.load %arg7[%c0_23, %c0_24] : memref<8x128xf32, #tpu.memory_space<vmem>>, vector<8x128xf32>
      tpu.vector_store %arg7[%c0_23, %c0_24], %46 {strides = array<i32>} : memref<8x128xf32, #tpu.memory_space<vmem>>, vector<8x128xf32>,
    } else {
    }
    %c0 = arith.constant 0 : index
    %c0_1 = arith.constant 0 : index
    %3 = vector.load %arg2[%c0, %c0_1] : memref<8x128xf32, #tpu.memory_space<vmem>>, vector<8x128xf32>
    %c0_2 = arith.constant 0 : index
    %c0_3 = arith.constant 0 : index
    %4 = vector.load %arg3[%c0_2, %c0_3] : memref<8x128xf32, #tpu.memory_space<vmem>>, vector<8x128xf32>
    %c0_4 = arith.constant 0 : index
    %c0_5 = arith.constant 0 : index
    %5 = vector.load %arg4[%c0_4, %c0_5] : memref<1x128xf32, #tpu.memory_space<vmem>>, vector<1x128xf32>
    %cst = arith.constant dense<0xFF800000> : vector<8xf32>
    %6 = vector.multi_reduction <maximumf>, %3, %cst [1] : vector<8x128xf32> to vector<8xf32>
    %7 = vector.shape_cast %6 : vector<8xf32> to vector<8x1xf32>
    %8 = vector.broadcast %7 : vector<8x1xf32> to vector<8x128xf32>
    %9 = arith.subf %3, %8 : vector<8x128xf32>
    %10 = math.exp %9 : vector<8x128xf32>
    %c0_6 = arith.constant 0 : index
    %c0_7 = arith.constant 0 : index
    %11 = vector.load %arg5[%c0_6, %c0_7] : memref<128x128xf32, #tpu.memory_space<vmem>>, vector<128x128xf32>
    %cst_8 = arith.constant dense<0.000000e+00> : vector<8x128xf32>
    %12 = tpu.matmul %10, %11, %cst_8 {dimension_numbers = #tpu.dot_dimension_numbers<[1], [0], [0], [1], [0, 0, 1, 1], [], []>, precision = #tpu.contract_precision<fp32>} : vector<8x128xf32>, vector<128x128xf32>, vector<8x128xf32> -> vector<8x128xf32>
    %cst_9 = arith.constant 1.000000e-30 : f32
    %13 = vector.broadcast %cst_9 : f32 to vector<8x128xf32>
    %14 = arith.maximumf %12, %13 : vector<8x128xf32>
    %15 = math.log %14 : vector<8x128xf32>
    %16 = arith.subf %9, %15 : vector<8x128xf32>
    %17 = tpu.reciprocal %14 {approx = true} : vector<8x128xf32> -> vector<8x128xf32>
    %18 = arith.mulf %14, %17 : vector<8x128xf32>
    %cst_10 = arith.constant 2.000000e+00 : f32
    %19 = vector.broadcast %cst_10 : f32 to vector<8x128xf32>
    %20 = arith.subf %19, %18 : vector<8x128xf32>
    %21 = arith.mulf %17, %20 : vector<8x128xf32>
    %22 = arith.mulf %14, %21 : vector<8x128xf32>
    %cst_11 = arith.constant 2.000000e+00 : f32
    %23 = vector.broadcast %cst_11 : f32 to vector<8x128xf32>
    %24 = arith.subf %23, %22 : vector<8x128xf32>
    %25 = arith.mulf %21, %24 : vector<8x128xf32>
    %26 = arith.mulf %10, %25 : vector<8x128xf32>
    %cst_12 = arith.constant 1.000000e+00 : f32
    %27 = vector.broadcast %cst_12 : f32 to vector<8x128xf32>
    %28 = arith.minimumf %26, %27 : vector<8x128xf32>
    %cst_13 = arith.constant 0.000000e+00 : f32
    %29 = vector.broadcast %cst_13 : f32 to vector<8x128xf32>
    %30 = arith.subf %29, %4 : vector<8x128xf32>
    %31 = arith.mulf %30, %16 : vector<8x128xf32>
    %cst_14 = arith.constant 1.000000e+00 : f32
    %32 = vector.broadcast %cst_14 : f32 to vector<8x128xf32>
    %33 = arith.subf %32, %28 : vector<8x128xf32>
    %cst_15 = arith.constant 0.000000e+00 : f32
    %34 = vector.broadcast %cst_15 : f32 to vector<8x128xf32>
    %35 = arith.maximumf %33, %34 : vector<8x128xf32>
    %36 = arith.mulf %35, %35 : vector<8x128xf32>
    %37 = arith.mulf %31, %36 : vector<8x128xf32>
    %38 = vector.broadcast %5 : vector<1x128xf32> to vector<8x128xf32>
    %39 = arith.mulf %37, %38 : vector<8x128xf32>
    %c0_16 = arith.constant 0 : index
    %c0_17 = arith.constant 0 : index
    %40 = vector.load %arg7[%c0_16, %c0_17] : memref<8x128xf32, #tpu.memory_space<vmem>>, vector<8x128xf32>
    %41 = arith.addf %40, %39 : vector<8x128xf32>
    %c0_18 = arith.constant 0 : index
    %c0_19 = arith.constant 0 : index
    %42 = vector.load %arg7[%c0_18, %c0_19] : memref<8x128xf32, #tpu.memory_space<vmem>>, vector<8x128xf32>
    tpu.vector_store %arg7[%c0_18, %c0_19], %41 {strides = array<i32>} : memref<8x128xf32, #tpu.memory_space<vmem>>, vector<8x128xf32>,
    %c0_i32_20 = arith.constant 0 : i32
    %43 = arith.cmpi eq, %arg1, %c0_i32_20 : i32
    %44 = arith.extui %43 : i1 to i32
    %c0_i32_21 = arith.constant 0 : i32
    %45 = arith.cmpi ne, %44, %c0_i32_21 : i32
    scf.if %45 {
      %c0_22 = arith.constant 0 : index
      %c0_23 = arith.constant 0 : index
      %46 = vector.load %arg7[%c0_22, %c0_23] : memref<8x128xf32, #tpu.memory_space<vmem>>, vector<8x128xf32>
      %47 = vector.shape_cast %46 : vector<8x128xf32> to vector<1x8x128xf32>
      %cst_24 = arith.constant dense<0.000000e+00> : vector<1xf32>
      %48 = vector.multi_reduction <add>, %47, %cst_24 [1, 2] : vector<1x8x128xf32> to vector<1xf32>
      %49 = vector.shape_cast %48 : vector<1xf32> to vector<1x1x1xf32>
      %50 = vector.extract %49[0, 0, 0] : f32 from vector<1x1x1xf32>
      %51 = vector.broadcast %50 : f32 to vector<1x8x128xf32>
      %c0_25 = arith.constant 0 : index
      %c0_26 = arith.constant 0 : index
      %c0_27 = arith.constant 0 : index
      %52 = vector.load %arg6[%c0_25, %c0_26, %c0_27] : memref<1x8x128xf32, #tpu.memory_space<vmem>>, vector<1x8x128xf32>
      tpu.vector_store %arg6[%c0_25, %c0_26, %c0_27], %51 {strides = array<i32>} : memref<1x8x128xf32, #tpu.memory_space<vmem>>, vector<1x8x128xf32>,
    } else {
    }
    return
  }
  func.func @transform_0(%arg0: i32, %arg1: i32) -> (i32, i32) {
    %c1_i32 = arith.constant 1 : i32
    %0 = arith.muli %arg0, %c1_i32 : i32
    %1 = arith.addi %0, %arg1 : i32
    %c0_i32 = arith.constant 0 : i32
    %c0_i32_0 = arith.constant 0 : i32
    return %1, %c0_i32 : i32, i32
  }
  func.func @transform_1(%arg0: i32, %arg1: i32) -> (i32, i32) {
    %c1_i32 = arith.constant 1 : i32
    %0 = arith.muli %arg0, %c1_i32 : i32
    %1 = arith.addi %0, %arg1 : i32
    %c0_i32 = arith.constant 0 : i32
    %c0_i32_0 = arith.constant 0 : i32
    return %1, %c0_i32 : i32, i32
  }
  func.func @transform_2(%arg0: i32, %arg1: i32) -> (i32, i32) {
    %c0_i32 = arith.constant 0 : i32
    %c0_i32_0 = arith.constant 0 : i32
    %c0_i32_1 = arith.constant 0 : i32
    return %c0_i32, %c0_i32_0 : i32, i32
  }
  func.func @transform_3(%arg0: i32, %arg1: i32) -> (i32, i32) {
    %c0_i32 = arith.constant 0 : i32
    %c0_i32_0 = arith.constant 0 : i32
    %c0_i32_1 = arith.constant 0 : i32
    return %c0_i32, %c0_i32_0 : i32, i32
  }
  func.func @transform_4(%arg0: i32, %arg1: i32) -> (i32, i32, i32) {
    %c0_i32 = arith.constant 0 : i32
    %c0_i32_0 = arith.constant 0 : i32
    %c0_i32_1 = arith.constant 0 : i32
    return %arg0, %c0_i32, %c0_i32_0 : i32, i32, i32
  }
}

</mosaic_0001>

<llo_original>
// kernel: tpu_custom_call.1
$region0: #{tpu_custom_call.1}
  #allocation0 [shape = 'u32[]', space=smem, size = 0x4, offset = 0x4, fixed_abs, tag = 'smem constant byte address 0x4 - core index']
  #allocation1 [shape = 'u32[144,128]{1,0:T(1,128)}', space=vmem, size = 0x12000, scoped, tag = 'internal scratch']
  #allocation2 [shape = 'f32[8,128]{1,0:T(8,128)}', space=vmem, size = 0x1000, scoped, tag = 'scratch operand']
  %s0 = inlined_call_operand.hbm [shape: f32[8,128], index: 0, kind: input, shape index: {}]
  %s1 = inlined_call_operand.hbm [shape: f32[8,128], index: 1, kind: input, shape index: {}]
  %s2 = inlined_call_operand.vmem [shape: f32[1,128], index: 2, kind: input, shape index: {}]
  %s3 = inlined_call_operand.hbm [shape: f32[128,128], index: 3, kind: input, shape index: {}]
  %s4 = inlined_call_operand.hbm [shape: f32[1,8,128], index: 4, kind: output, shape index: {}]
  %s5 = sld [smem:[#allocation0]]
  $region46: #{tpu_custom_call.1} parent=0
    _
  %s7 = ssub.s32 1, %s5
  %s8 = scalar_select 0, %s7, %s5
  $region1: #{tpu_custom_call.1} parent=0
    #allocation3 [shape = 'u8[4096]{0}', space=vmem, size = 0x1000, scoped, tag = 'input window, operand 0, single buffered']
    #allocation4 [shape = 's32[1]{0}', space=sflag, size = 0x4, scoped, tag = 'scoped memory for tpu_custom_call.1']
    #allocation5 [shape = 's32[1]{0}', space=sflag, size = 0x4, scoped, tag = 'scoped memory for tpu_custom_call.1']
    #allocation6 [shape = 'u8[4096]{0}', space=vmem, size = 0x1000, scoped, tag = 'input window, operand 1, single buffered']
    #allocation7 [shape = 's32[1]{0}', space=sflag, size = 0x4, scoped, tag = 'scoped memory for tpu_custom_call.1']
    #allocation8 [shape = 'u8[65536]{0}', space=vmem, size = 0x10000, scoped, tag = 'input window, operand 3, single buffered']
    #allocation9 [shape = 'u8[4096]{0}', space=vmem, size = 0x1000, scoped, tag = 'output window, operand 0, single buffered']
    %9 = vsyncpa [#allocation4], 0
    %10 = vsyncpa [#allocation7], 0
    %11 = vsyncpa [#allocation5], 0
    // Predicated region
    $region2: #{tpu_custom_call.1} parent=1 // pred_check
      _
    $region3: #{tpu_custom_call.1} parent=1 // pred_check_branch
      %13 = sbr.rel (0) target = $region5
    $region4: #{tpu_custom_call.1} parent=1 // pred_region
      %s14 = sadd.s32 0, 0
      %s16 = ssub.s32 128, 128
      %17 = vsyncadd [#allocation4], %s16
      %s18 = smul.addr %s14, 128
      %s19 = scalar_lea.hbm %s0, %s18
      %s21 = sshll.u32 [#allocation3], 4
      %s22 = int_to_ptr.vmem [resolvable:$true] %s21
      %24 = dma.hbm_to_vmem [thread:$0]  %s19, 128, %s22, [#allocation4]
    $region5: #{tpu_custom_call.1} parent=1 // pred_fallthru
      _
    // Predicated region
    $region6: #{tpu_custom_call.1} parent=1 // pred_check
      _
    $region7: #{tpu_custom_call.1} parent=1 // pred_check_branch
      %26 = sbr.rel (0) target = $region9
    $region8: #{tpu_custom_call.1} parent=1 // pred_region
      %s27 = sadd.s32 0, 0
      %s29 = ssub.s32 128, 128
      %30 = vsyncadd [#allocation7], %s29
      %s31 = smul.addr %s27, 128
      %s32 = scalar_lea.hbm %s1, %s31
      %s34 = sshll.u32 [#allocation6], 4
      %s35 = int_to_ptr.vmem [resolvable:$true] %s34
      %37 = dma.hbm_to_vmem [thread:$0]  %s32, 128, %s35, [#allocation7]
    $region9: #{tpu_custom_call.1} parent=1 // pred_fallthru
      _
    // Predicated region
    $region10: #{tpu_custom_call.1} parent=1 // pred_check
      _
    $region11: #{tpu_custom_call.1} parent=1 // pred_check_branch
      %39 = sbr.rel (0) target = $region13
    $region12: #{tpu_custom_call.1} parent=1 // pred_region
      _
    $region13: #{tpu_custom_call.1} parent=1 // pred_fallthru
      _
    // Predicated region
    $region14: #{tpu_custom_call.1} parent=1 // pred_check
      _
    $region15: #{tpu_custom_call.1} parent=1 // pred_check_branch
      %41 = sbr.rel (0) target = $region17
    $region16: #{tpu_custom_call.1} parent=1 // pred_region
      %s43 = ssub.s32 2048, 2048
      %44 = vsyncadd [#allocation7], %s43
      %s45 = sshll.u32 [#allocation8], 4
      %s46 = int_to_ptr.vmem [resolvable:$true] %s45
      %51 = dma.hbm_to_vmem [thread:$0]  %s3, 2048, %s46, [#allocation7], 128, 128, 8
    $region17: #{tpu_custom_call.1} parent=1 // pred_fallthru
      _
    // Predicated region
    $region18: #{tpu_custom_call.1} parent=1 // pred_check
      _
    $region19: #{tpu_custom_call.1} parent=1 // pred_check_branch
      %53 = sbr.rel (0) target = $region21
    $region20: #{tpu_custom_call.1} parent=1 // pred_region
      %54 = dma.done [#allocation4], 128
    $region21: #{tpu_custom_call.1} parent=1 // pred_fallthru
      _
    // Predicated region
    $region22: #{tpu_custom_call.1} parent=1 // pred_check
      _
    $region23: #{tpu_custom_call.1} parent=1 // pred_check_branch
      %56 = sbr.rel (0) target = $region25
    $region24: #{tpu_custom_call.1} parent=1 // pred_region
      %57 = dma.done [#allocation7], 128
    $region25: #{tpu_custom_call.1} parent=1 // pred_fallthru
      _
    // Predicated region
    $region26: #{tpu_custom_call.1} parent=1 // pred_check
      _
    $region27: #{tpu_custom_call.1} parent=1 // pred_check_branch
      %59 = sbr.rel (0) target = $region29
    $region28: #{tpu_custom_call.1} parent=1 // pred_region
      %60 = dma.done [#allocation7], 2048
    $region29: #{tpu_custom_call.1} parent=1 // pred_fallthru
      _
    %s61 = sadd.s32 0, 0
    %s62 = sadd.s32 0, 0
    %p63 = scmp.eq.s32.totalorder 0, 0
    // Predicated region
    $region30: #{tpu_custom_call.1} parent=1 // pred_check
      %p64 = pneg %p63
    $region31: #{tpu_custom_call.1} parent=1 // pred_check_branch
      %66 = sbr.rel (%p64) target = $region33
    $region32: #{tpu_custom_call.1} parent=1 // pred_region
      %67 = vst [vmem:[#allocation2] sm:$0xff] 0.0
    $region33: #{tpu_custom_call.1} parent=1 // pred_fallthru
      _
    %v68 = vld [vmem:[#allocation3] sm:$0xff]
    %v69 = vld [vmem:[#allocation6] sm:$0xff]
    %v70 = vld [vmem:[%s2] sm:$0x1]
    %71 = vmax.xlane.f32.xlu0 %v68
    %v72 = vpop.xlane.xlu0 %71
    %v73 = vsub.f32 %v68, %v72
    %v74 = vmul.f32 %v73, 1.442695
    %v75 = vpow.pop %v74
    %v76 = vld [vmem:[#allocation8] sm:$0xff]
    %v77 = vld [vmem:[#allocation8 + $0x8] sm:$0xff]
    %v78 = vld [vmem:[#allocation8 + $0x10] sm:$0xff]
    %v79 = vld [vmem:[#allocation8 + $0x18] sm:$0xff]
    %v80 = vld [vmem:[#allocation8 + $0x20] sm:$0xff]
    %v81 = vld [vmem:[#allocation8 + $0x28] sm:$0xff]
    %v82 = vld [vmem:[#allocation8 + $0x30] sm:$0xff]
    %v83 = vld [vmem:[#allocation8 + $0x38] sm:$0xff]
    %v84 = vld [vmem:[#allocation8 + $0x40] sm:$0xff]
    %v85 = vld [vmem:[#allocation8 + $0x48] sm:$0xff]
    %v86 = vld [vmem:[#allocation8 + $0x50] sm:$0xff]
    %v87 = vld [vmem:[#allocation8 + $0x58] sm:$0xff]
    %v88 = vld [vmem:[#allocation8 + $0x60] sm:$0xff]
    %v89 = vld [vmem:[#allocation8 + $0x68] sm:$0xff]
    %v90 = vld [vmem:[#allocation8 + $0x70] sm:$0xff]
    %v91 = vld [vmem:[#allocation8 + $0x78] sm:$0xff]
    %92 = vmatprep.subr.mxu0 0.0
    %v93 = vand.u32 %v76, 4294901760
    %94 = vmatpush1.msra.mxu0 %v93
    %95 = vmatprep.subr.mxu0 0.0
    %v96 = vand.u32 %v77, 4294901760
    %97 = vmatpush1.msra.mxu0 %v96
    %98 = vmatprep.subr.mxu0 0.0
    %v99 = vand.u32 %v78, 4294901760
    %100 = vmatpush1.msra.mxu0 %v99
    %101 = vmatprep.subr.mxu0 0.0
    %v102 = vand.u32 %v79, 4294901760
    %103 = vmatpush1.msra.mxu0 %v102
    %104 = vmatprep.subr.mxu0 0.0
    %v105 = vand.u32 %v80, 4294901760
    %106 = vmatpush1.msra.mxu0 %v105
    %107 = vmatprep.subr.mxu0 0.0
    %v108 = vand.u32 %v81, 4294901760
    %109 = vmatpush1.msra.mxu0 %v108
    %110 = vmatprep.subr.mxu0 0.0
    %v111 = vand.u32 %v82, 4294901760
    %112 = vmatpush1.msra.mxu0 %v111
    %113 = vmatprep.subr.mxu0 0.0
    %v114 = vand.u32 %v83, 4294901760
    %115 = vmatpush1.msra.mxu0 %v114
    %116 = vmatprep.subr.mxu0 0.0
    %v117 = vand.u32 %v84, 4294901760
    %118 = vmatpush1.msra.mxu0 %v117
    %119 = vmatprep.subr.mxu0 0.0
    %v120 = vand.u32 %v85, 4294901760
    %121 = vmatpush1.msra.mxu0 %v120
    %122 = vmatprep.subr.mxu0 0.0
    %v123 = vand.u32 %v86, 4294901760
    %124 = vmatpush1.msra.mxu0 %v123
    %125 = vmatprep.subr.mxu0 0.0
    %v126 = vand.u32 %v87, 4294901760
    %127 = vmatpush1.msra.mxu0 %v126
    %128 = vmatprep.subr.mxu0 0.0
    %v129 = vand.u32 %v88, 4294901760
    %130 = vmatpush1.msra.mxu0 %v129
    %131 = vmatprep.subr.mxu0 0.0
    %v132 = vand.u32 %v89, 4294901760
    %133 = vmatpush1.msra.mxu0 %v132
    %134 = vmatprep.subr.mxu0 0.0
    %v135 = vand.u32 %v90, 4294901760
    %136 = vmatpush1.msra.mxu0 %v135
    %137 = vmatprep.subr.mxu0 0.0
    %v138 = vand.u32 %v91, 4294901760
    %139 = vmatpush1.msra.mxu0 %v138
    %140 = vmatprep.subr.mxu0 0.0
    %141 = vmatpush1.msra.mxu0 0.0
    %142 = vmatprep.subr.mxu0 0.0
    %143 = vmatpush1.msra.mxu0 0.0
    %144 = vmatprep.subr.mxu0 0.0
    %145 = vmatpush1.msra.mxu0 0.0
    %146 = vmatprep.subr.mxu0 0.0
    %147 = vmatpush1.msra.mxu0 0.0
    %148 = vmatprep.subr.mxu0 0.0
    %149 = vmatpush1.msra.mxu0 0.0
    %150 = vmatprep.subr.mxu0 0.0
    %151 = vmatpush1.msra.mxu0 0.0
    %152 = vmatprep.subr.mxu0 0.0
    %153 = vmatpush1.msra.mxu0 0.0
    %154 = vmatprep.subr.mxu0 0.0
    %155 = vmatpush1.msra.mxu0 0.0
    %156 = vmatprep.subr.mxu0 0.0
    %157 = vmatpush1.msra.mxu0 0.0
    %158 = vmatprep.subr.mxu0 0.0
    %159 = vmatpush1.msra.mxu0 0.0
    %160 = vmatprep.subr.mxu0 0.0
    %161 = vmatpush1.msra.mxu0 0.0
    %162 = vmatprep.subr.mxu0 0.0
    %163 = vmatpush1.msra.mxu0 0.0
    %164 = vmatprep.subr.mxu0 0.0
    %165 = vmatpush1.msra.mxu0 0.0
    %166 = vmatprep.subr.mxu0 0.0
    %167 = vmatpush1.msra.mxu0 0.0
    %168 = vmatprep.subr.mxu0 0.0
    %169 = vmatpush1.msra.mxu0 0.0
    %170 = vmatprep.subr.mxu0 0.0
    %171 = vmatpush1.msra.mxu0 0.0
    %172 = vmatprep.mubr.f32.mxu0 0.0
    %v173 = vand.u32 %v75, 4294901760
    %v174 = vsub.f32 %v75, %v173
    %v175 = vand.u32 %v174, 4294901760
    %v176 = vsub.f32 %v174, %v175
    %v177 = vand.u32 %v176, 4294901760
    %178 = vmatmul.mubr.f32.gmra.mrb[0].mxu0 %v177
    %v179 = vpop.f32.mrb[0].mxu0
    %v180 = vadd.f32 0.0, %v179
    %v181 = vpop.f32.mrb[0].mxu0
    %182 = vdwg.mxu0
    %183 = vmatprep.subr.mxu0 0.0
    %v184 = vand.u32 %v76, 4294901760
    %v185 = vsub.f32 %v76, %v184
    %v186 = vand.u32 %v185, 4294901760
    %v187 = vsub.f32 %v185, %v186
    %v188 = vand.u32 %v187, 4294901760
    %189 = vmatpush1.msra.mxu0 %v188
    %190 = vmatprep.subr.mxu0 0.0
    %v191 = vand.u32 %v77, 4294901760
    %v192 = vsub.f32 %v77, %v191
    %v193 = vand.u32 %v192, 4294901760
    %v194 = vsub.f32 %v192, %v193
    %v195 = vand.u32 %v194, 4294901760
    %196 = vmatpush1.msra.mxu0 %v195
    %197 = vmatprep.subr.mxu0 0.0
    %v198 = vand.u32 %v78, 4294901760
    %v199 = vsub.f32 %v78, %v198
    %v200 = vand.u32 %v199, 4294901760
    %v201 = vsub.f32 %v199, %v200
    %v202 = vand.u32 %v201, 4294901760
    %203 = vmatpush1.msra.mxu0 %v202
    %204 = vmatprep.subr.mxu0 0.0
    %v205 = vand.u32 %v79, 4294901760
    %v206 = vsub.f32 %v79, %v205
    %v207 = vand.u32 %v206, 4294901760
    %v208 = vsub.f32 %v206, %v207
    %v209 = vand.u32 %v208, 4294901760
    %210 = vmatpush1.msra.mxu0 %v209
    %211 = vmatprep.subr.mxu0 0.0
    %v212 = vand.u32 %v80, 4294901760
    %v213 = vsub.f32 %v80, %v212
    %v214 = vand.u32 %v213, 4294901760
    %v215 = vsub.f32 %v213, %v214
    %v216 = vand.u32 %v215, 4294901760
    %217 = vmatpush1.msra.mxu0 %v216
    %218 = vmatprep.subr.mxu0 0.0
    %v219 = vand.u32 %v81, 4294901760
    %v220 = vsub.f32 %v81, %v219
    %v221 = vand.u32 %v220, 4294901760
    %v222 = vsub.f32 %v220, %v221
    %v223 = vand.u32 %v222, 4294901760
    %224 = vmatpush1.msra.mxu0 %v223
    %225 = vmatprep.subr.mxu0 0.0
    %v226 = vand.u32 %v82, 4294901760
    %v227 = vsub.f32 %v82, %v226
    %v228 = vand.u32 %v227, 4294901760
    %v229 = vsub.f32 %v227, %v228
    %v230 = vand.u32 %v229, 4294901760
    %231 = vmatpush1.msra.mxu0 %v230
    %232 = vmatprep.subr.mxu0 0.0
    %v233 = vand.u32 %v83, 4294901760
    %v234 = vsub.f32 %v83, %v233
    %v235 = vand.u32 %v234, 4294901760
    %v236 = vsub.f32 %v234, %v235
    %v237 = vand.u32 %v236, 4294901760
    %238 = vmatpush1.msra.mxu0 %v237
    %239 = vmatprep.subr.mxu0 0.0
    %v240 = vand.u32 %v84, 4294901760
    %v241 = vsub.f32 %v84, %v240
    %v242 = vand.u32 %v241, 4294901760
    %v243 = vsub.f32 %v241, %v242
    %v244 = vand.u32 %v243, 4294901760
    %245 = vmatpush1.msra.mxu0 %v244
    %246 = vmatprep.subr.mxu0 0.0
    %v247 = vand.u32 %v85, 4294901760
    %v248 = vsub.f32 %v85, %v247
    %v249 = vand.u32 %v248, 4294901760
    %v250 = vsub.f32 %v248, %v249
    %v251 = vand.u32 %v250, 4294901760
    %252 = vmatpush1.msra.mxu0 %v251
    %253 = vmatprep.subr.mxu0 0.0
    %v254 = vand.u32 %v86, 4294901760
    %v255 = vsub.f32 %v86, %v254
    %v256 = vand.u32 %v255, 4294901760
    %v257 = vsub.f32 %v255, %v256
    %v258 = vand.u32 %v257, 4294901760
    %259 = vmatpush1.msra.mxu0 %v258
    %260 = vmatprep.subr.mxu0 0.0
    %v261 = vand.u32 %v87, 4294901760
    %v262 = vsub.f32 %v87, %v261
    %v263 = vand.u32 %v262, 4294901760
    %v264 = vsub.f32 %v262, %v263
    %v265 = vand.u32 %v264, 4294901760
    %266 = vmatpush1.msra.mxu0 %v265
    %267 = vmatprep.subr.mxu0 0.0
    %v268 = vand.u32 %v88, 4294901760
    %v269 = vsub.f32 %v88, %v268
    %v270 = vand.u32 %v269, 4294901760
    %v271 = vsub.f32 %v269, %v270
    %v272 = vand.u32 %v271, 4294901760
    %273 = vmatpush1.msra.mxu0 %v272
    %274 = vmatprep.subr.mxu0 0.0
    %v275 = vand.u32 %v89, 4294901760
    %v276 = vsub.f32 %v89, %v275
    %v277 = vand.u32 %v276, 4294901760
    %v278 = vsub.f32 %v276, %v277
    %v279 = vand.u32 %v278, 4294901760
    %280 = vmatpush1.msra.mxu0 %v279
    %281 = vmatprep.subr.mxu0 0.0
    %v282 = vand.u32 %v90, 4294901760
    %v283 = vsub.f32 %v90, %v282
    %v284 = vand.u32 %v283, 4294901760
    %v285 = vsub.f32 %v283, %v284
    %v286 = vand.u32 %v285, 4294901760
    %287 = vmatpush1.msra.mxu0 %v286
    %288 = vmatprep.subr.mxu0 0.0
    %v289 = vand.u32 %v91, 4294901760
    %v290 = vsub.f32 %v91, %v289
    %v291 = vand.u32 %v290, 4294901760
    %v292 = vsub.f32 %v290, %v291
    %v293 = vand.u32 %v292, 4294901760
    %294 = vmatpush1.msra.mxu0 %v293
    %295 = vmatprep.subr.mxu0 0.0
    %296 = vmatpush1.msra.mxu0 0.0
    %297 = vmatprep.subr.mxu0 0.0
    %298 = vmatpush1.msra.mxu0 0.0
    %299 = vmatprep.subr.mxu0 0.0
    %300 = vmatpush1.msra.mxu0 0.0
    %301 = vmatprep.subr.mxu0 0.0
    %302 = vmatpush1.msra.mxu0 0.0
    %303 = vmatprep.subr.mxu0 0.0
    %304 = vmatpush1.msra.mxu0 0.0
    %305 = vmatprep.subr.mxu0 0.0
    %306 = vmatpush1.msra.mxu0 0.0
    %307 = vmatprep.subr.mxu0 0.0
    %308 = vmatpush1.msra.mxu0 0.0
    %309 = vmatprep.subr.mxu0 0.0
    %310 = vmatpush1.msra.mxu0 0.0
    %311 = vmatprep.subr.mxu0 0.0
    %312 = vmatpush1.msra.mxu0 0.0
    %313 = vmatprep.subr.mxu0 0.0
    %314 = vmatpush1.msra.mxu0 0.0
    %315 = vmatprep.subr.mxu0 0.0
    %316 = vmatpush1.msra.mxu0 0.0
    %317 = vmatprep.subr.mxu0 0.0
    %318 = vmatpush1.msra.mxu0 0.0
    %319 = vmatprep.subr.mxu0 0.0
    %320 = vmatpush1.msra.mxu0 0.0
    %321 = vmatprep.subr.mxu0 0.0
    %322 = vmatpush1.msra.mxu0 0.0
    %323 = vmatprep.subr.mxu0 0.0
    %324 = vmatpush1.msra.mxu0 0.0
    %325 = vmatprep.subr.mxu0 0.0
    %326 = vmatpush1.msra.mxu0 0.0
    %327 = vmatprep.mubr.f32.mxu0 0.0
    %v328 = vand.u32 %v75, 4294901760
    %329 = vmatmul.mubr.f32.gmra.mrb[0].mxu0 %v328
    %v330 = vpop.f32.mrb[0].mxu0
    %v331 = vadd.f32 %v180, %v330
    %v332 = vpop.f32.mrb[0].mxu0
    %333 = vdwg.mxu0
    %334 = vmatprep.subr.mxu0 0.0
    %v335 = vand.u32 %v76, 4294901760
    %v336 = vsub.f32 %v76, %v335
    %337 = vmatpush1.msra.mxu0 %v336
    %338 = vmatprep.subr.mxu0 0.0
    %v339 = vand.u32 %v77, 4294901760
    %v340 = vsub.f32 %v77, %v339
    %341 = vmatpush1.msra.mxu0 %v340
    %342 = vmatprep.subr.mxu0 0.0
    %v343 = vand.u32 %v78, 4294901760
    %v344 = vsub.f32 %v78, %v343
    %345 = vmatpush1.msra.mxu0 %v344
    %346 = vmatprep.subr.mxu0 0.0
    %v347 = vand.u32 %v79, 4294901760
    %v348 = vsub.f32 %v79, %v347
    %349 = vmatpush1.msra.mxu0 %v348
    %350 = vmatprep.subr.mxu0 0.0
    %v351 = vand.u32 %v80, 4294901760
    %v352 = vsub.f32 %v80, %v351
    %353 = vmatpush1.msra.mxu0 %v352
    %354 = vmatprep.subr.mxu0 0.0
    %v355 = vand.u32 %v81, 4294901760
    %v356 = vsub.f32 %v81, %v355
    %357 = vmatpush1.msra.mxu0 %v356
    %358 = vmatprep.subr.mxu0 0.0
    %v359 = vand.u32 %v82, 4294901760
    %v360 = vsub.f32 %v82, %v359
    %361 = vmatpush1.msra.mxu0 %v360
    %362 = vmatprep.subr.mxu0 0.0
    %v363 = vand.u32 %v83, 4294901760
    %v364 = vsub.f32 %v83, %v363
    %365 = vmatpush1.msra.mxu0 %v364
    %366 = vmatprep.subr.mxu0 0.0
    %v367 = vand.u32 %v84, 4294901760
    %v368 = vsub.f32 %v84, %v367
    %369 = vmatpush1.msra.mxu0 %v368
    %370 = vmatprep.subr.mxu0 0.0
    %v371 = vand.u32 %v85, 4294901760
    %v372 = vsub.f32 %v85, %v371
    %373 = vmatpush1.msra.mxu0 %v372
    %374 = vmatprep.subr.mxu0 0.0
    %v375 = vand.u32 %v86, 4294901760
    %v376 = vsub.f32 %v86, %v375
    %377 = vmatpush1.msra.mxu0 %v376
    %378 = vmatprep.subr.mxu0 0.0
    %v379 = vand.u32 %v87, 4294901760
    %v380 = vsub.f32 %v87, %v379
    %381 = vmatpush1.msra.mxu0 %v380
    %382 = vmatprep.subr.mxu0 0.0
    %v383 = vand.u32 %v88, 4294901760
    %v384 = vsub.f32 %v88, %v383
    %385 = vmatpush1.msra.mxu0 %v384
    %386 = vmatprep.subr.mxu0 0.0
    %v387 = vand.u32 %v89, 4294901760
    %v388 = vsub.f32 %v89, %v387
    %389 = vmatpush1.msra.mxu0 %v388
    %390 = vmatprep.subr.mxu0 0.0
    %v391 = vand.u32 %v90, 4294901760
    %v392 = vsub.f32 %v90, %v391
    %393 = vmatpush1.msra.mxu0 %v392
    %394 = vmatprep.subr.mxu0 0.0
    %v395 = vand.u32 %v91, 4294901760
    %v396 = vsub.f32 %v91, %v395
    %397 = vmatpush1.msra.mxu0 %v396
    %398 = vmatprep.subr.mxu0 0.0
    %399 = vmatpush1.msra.mxu0 0.0
    %400 = vmatprep.subr.mxu0 0.0
    %401 = vmatpush1.msra.mxu0 0.0
    %402 = vmatprep.subr.mxu0 0.0
    %403 = vmatpush1.msra.mxu0 0.0
    %404 = vmatprep.subr.mxu0 0.0
    %405 = vmatpush1.msra.mxu0 0.0
    %406 = vmatprep.subr.mxu0 0.0
    %407 = vmatpush1.msra.mxu0 0.0
    %408 = vmatprep.subr.mxu0 0.0
    %409 = vmatpush1.msra.mxu0 0.0
    %410 = vmatprep.subr.mxu0 0.0
    %411 = vmatpush1.msra.mxu0 0.0
    %412 = vmatprep.subr.mxu0 0.0
    %413 = vmatpush1.msra.mxu0 0.0
    %414 = vmatprep.subr.mxu0 0.0
    %415 = vmatpush1.msra.mxu0 0.0
    %416 = vmatprep.subr.mxu0 0.0
    %417 = vmatpush1.msra.mxu0 0.0
    %418 = vmatprep.subr.mxu0 0.0
    %419 = vmatpush1.msra.mxu0 0.0
    %420 = vmatprep.subr.mxu0 0.0
    %421 = vmatpush1.msra.mxu0 0.0
    %422 = vmatprep.subr.mxu0 0.0
    %423 = vmatpush1.msra.mxu0 0.0
    %424 = vmatprep.subr.mxu0 0.0
    %425 = vmatpush1.msra.mxu0 0.0
    %426 = vmatprep.subr.mxu0 0.0
    %427 = vmatpush1.msra.mxu0 0.0
    %428 = vmatprep.subr.mxu0 0.0
    %429 = vmatpush1.msra.mxu0 0.0
    %430 = vmatprep.mubr.f32.mxu0 0.0
    %v431 = vand.u32 %v75, 4294901760
    %v432 = vsub.f32 %v75, %v431
    %433 = vmatmul.mubr.f32.gmra.mrb[0].mxu0 %v432
    %v434 = vpop.f32.mrb[0].mxu0
    %v435 = vadd.f32 %v331, %v434
    %v436 = vpop.f32.mrb[0].mxu0
    %437 = vdwg.mxu0
    %438 = vmatprep.subr.mxu0 0.0
    %v439 = vand.u32 %v76, 4294901760
    %440 = vmatpush1.msra.mxu0 %v439
    %441 = vmatprep.subr.mxu0 0.0
    %v442 = vand.u32 %v77, 4294901760
    %443 = vmatpush1.msra.mxu0 %v442
    %444 = vmatprep.subr.mxu0 0.0
    %v445 = vand.u32 %v78, 4294901760
    %446 = vmatpush1.msra.mxu0 %v445
    %447 = vmatprep.subr.mxu0 0.0
    %v448 = vand.u32 %v79, 4294901760
    %449 = vmatpush1.msra.mxu0 %v448
    %450 = vmatprep.subr.mxu0 0.0
    %v451 = vand.u32 %v80, 4294901760
    %452 = vmatpush1.msra.mxu0 %v451
    %453 = vmatprep.subr.mxu0 0.0
    %v454 = vand.u32 %v81, 4294901760
    %455 = vmatpush1.msra.mxu0 %v454
    %456 = vmatprep.subr.mxu0 0.0
    %v457 = vand.u32 %v82, 4294901760
    %458 = vmatpush1.msra.mxu0 %v457
    %459 = vmatprep.subr.mxu0 0.0
    %v460 = vand.u32 %v83, 4294901760
    %461 = vmatpush1.msra.mxu0 %v460
    %462 = vmatprep.subr.mxu0 0.0
    %v463 = vand.u32 %v84, 4294901760
    %464 = vmatpush1.msra.mxu0 %v463
    %465 = vmatprep.subr.mxu0 0.0
    %v466 = vand.u32 %v85, 4294901760
    %467 = vmatpush1.msra.mxu0 %v466
    %468 = vmatprep.subr.mxu0 0.0
    %v469 = vand.u32 %v86, 4294901760
    %470 = vmatpush1.msra.mxu0 %v469
    %471 = vmatprep.subr.mxu0 0.0
    %v472 = vand.u32 %v87, 4294901760
    %473 = vmatpush1.msra.mxu0 %v472
    %474 = vmatprep.subr.mxu0 0.0
    %v475 = vand.u32 %v88, 4294901760
    %476 = vmatpush1.msra.mxu0 %v475
    %477 = vmatprep.subr.mxu0 0.0
    %v478 = vand.u32 %v89, 4294901760
    %479 = vmatpush1.msra.mxu0 %v478
    %480 = vmatprep.subr.mxu0 0.0
    %v481 = vand.u32 %v90, 4294901760
    %482 = vmatpush1.msra.mxu0 %v481
    %483 = vmatprep.subr.mxu0 0.0
    %v484 = vand.u32 %v91, 4294901760
    %485 = vmatpush1.msra.mxu0 %v484
    %486 = vmatprep.subr.mxu0 0.0
    %487 = vmatpush1.msra.mxu0 0.0
    %488 = vmatprep.subr.mxu0 0.0
    %489 = vmatpush1.msra.mxu0 0.0
    %490 = vmatprep.subr.mxu0 0.0
    %491 = vmatpush1.msra.mxu0 0.0
    %492 = vmatprep.subr.mxu0 0.0
    %493 = vmatpush1.msra.mxu0 0.0
    %494 = vmatprep.subr.mxu0 0.0
    %495 = vmatpush1.msra.mxu0 0.0
    %496 = vmatprep.subr.mxu0 0.0
    %497 = vmatpush1.msra.mxu0 0.0
    %498 = vmatprep.subr.mxu0 0.0
    %499 = vmatpush1.msra.mxu0 0.0
    %500 = vmatprep.subr.mxu0 0.0
    %501 = vmatpush1.msra.mxu0 0.0
    %502 = vmatprep.subr.mxu0 0.0
    %503 = vmatpush1.msra.mxu0 0.0
    %504 = vmatprep.subr.mxu0 0.0
    %505 = vmatpush1.msra.mxu0 0.0
    %506 = vmatprep.subr.mxu0 0.0
    %507 = vmatpush1.msra.mxu0 0.0
    %508 = vmatprep.subr.mxu0 0.0
    %509 = vmatpush1.msra.mxu0 0.0
    %510 = vmatprep.subr.mxu0 0.0
    %511 = vmatpush1.msra.mxu0 0.0
    %512 = vmatprep.subr.mxu0 0.0
    %513 = vmatpush1.msra.mxu0 0.0
    %514 = vmatprep.subr.mxu0 0.0
    %515 = vmatpush1.msra.mxu0 0.0
    %516 = vmatprep.subr.mxu0 0.0
    %517 = vmatpush1.msra.mxu0 0.0
    %518 = vmatprep.mubr.f32.mxu0 0.0
    %v519 = vand.u32 %v75, 4294901760
    %v520 = vsub.f32 %v75, %v519
    %v521 = vand.u32 %v520, 4294901760
    %522 = vmatmul.mubr.f32.gmra.mrb[0].mxu0 %v521
    %v523 = vpop.f32.mrb[0].mxu0
    %v524 = vadd.f32 %v435, %v523
    %v525 = vpop.f32.mrb[0].mxu0
    %526 = vdwg.mxu0
    %527 = vmatprep.subr.mxu0 0.0
    %v528 = vand.u32 %v76, 4294901760
    %v529 = vsub.f32 %v76, %v528
    %v530 = vand.u32 %v529, 4294901760
    %531 = vmatpush1.msra.mxu0 %v530
    %532 = vmatprep.subr.mxu0 0.0
    %v533 = vand.u32 %v77, 4294901760
    %v534 = vsub.f32 %v77, %v533
    %v535 = vand.u32 %v534, 4294901760
    %536 = vmatpush1.msra.mxu0 %v535
    %537 = vmatprep.subr.mxu0 0.0
    %v538 = vand.u32 %v78, 4294901760
    %v539 = vsub.f32 %v78, %v538
    %v540 = vand.u32 %v539, 4294901760
    %541 = vmatpush1.msra.mxu0 %v540
    %542 = vmatprep.subr.mxu0 0.0
    %v543 = vand.u32 %v79, 4294901760
    %v544 = vsub.f32 %v79, %v543
    %v545 = vand.u32 %v544, 4294901760
    %546 = vmatpush1.msra.mxu0 %v545
    %547 = vmatprep.subr.mxu0 0.0
    %v548 = vand.u32 %v80, 4294901760
    %v549 = vsub.f32 %v80, %v548
    %v550 = vand.u32 %v549, 4294901760
    %551 = vmatpush1.msra.mxu0 %v550
    %552 = vmatprep.subr.mxu0 0.0
    %v553 = vand.u32 %v81, 4294901760
    %v554 = vsub.f32 %v81, %v553
    %v555 = vand.u32 %v554, 4294901760
    %556 = vmatpush1.msra.mxu0 %v555
    %557 = vmatprep.subr.mxu0 0.0
    %v558 = vand.u32 %v82, 4294901760
    %v559 = vsub.f32 %v82, %v558
    %v560 = vand.u32 %v559, 4294901760
    %561 = vmatpush1.msra.mxu0 %v560
    %562 = vmatprep.subr.mxu0 0.0
    %v563 = vand.u32 %v83, 4294901760
    %v564 = vsub.f32 %v83, %v563
    %v565 = vand.u32 %v564, 4294901760
    %566 = vmatpush1.msra.mxu0 %v565
    %567 = vmatprep.subr.mxu0 0.0
    %v568 = vand.u32 %v84, 4294901760
    %v569 = vsub.f32 %v84, %v568
    %v570 = vand.u32 %v569, 4294901760
    %571 = vmatpush1.msra.mxu0 %v570
    %572 = vmatprep.subr.mxu0 0.0
    %v573 = vand.u32 %v85, 4294901760
    %v574 = vsub.f32 %v85, %v573
    %v575 = vand.u32 %v574, 4294901760
    %576 = vmatpush1.msra.mxu0 %v575
    %577 = vmatprep.subr.mxu0 0.0
    %v578 = vand.u32 %v86, 4294901760
    %v579 = vsub.f32 %v86, %v578
    %v580 = vand.u32 %v579, 4294901760
    %581 = vmatpush1.msra.mxu0 %v580
    %582 = vmatprep.subr.mxu0 0.0
    %v583 = vand.u32 %v87, 4294901760
    %v584 = vsub.f32 %v87, %v583
    %v585 = vand.u32 %v584, 4294901760
    %586 = vmatpush1.msra.mxu0 %v585
    %587 = vmatprep.subr.mxu0 0.0
    %v588 = vand.u32 %v88, 4294901760
    %v589 = vsub.f32 %v88, %v588
    %v590 = vand.u32 %v589, 4294901760
    %591 = vmatpush1.msra.mxu0 %v590
    %592 = vmatprep.subr.mxu0 0.0
    %v593 = vand.u32 %v89, 4294901760
    %v594 = vsub.f32 %v89, %v593
    %v595 = vand.u32 %v594, 4294901760
    %596 = vmatpush1.msra.mxu0 %v595
    %597 = vmatprep.subr.mxu0 0.0
    %v598 = vand.u32 %v90, 4294901760
    %v599 = vsub.f32 %v90, %v598
    %v600 = vand.u32 %v599, 4294901760
    %601 = vmatpush1.msra.mxu0 %v600
    %602 = vmatprep.subr.mxu0 0.0
    %v603 = vand.u32 %v91, 4294901760
    %v604 = vsub.f32 %v91, %v603
    %v605 = vand.u32 %v604, 4294901760
    %606 = vmatpush1.msra.mxu0 %v605
    %607 = vmatprep.subr.mxu0 0.0
    %608 = vmatpush1.msra.mxu0 0.0
    %609 = vmatprep.subr.mxu0 0.0
    %610 = vmatpush1.msra.mxu0 0.0
    %611 = vmatprep.subr.mxu0 0.0
    %612 = vmatpush1.msra.mxu0 0.0
    %613 = vmatprep.subr.mxu0 0.0
    %614 = vmatpush1.msra.mxu0 0.0
    %615 = vmatprep.subr.mxu0 0.0
    %616 = vmatpush1.msra.mxu0 0.0
    %617 = vmatprep.subr.mxu0 0.0
    %618 = vmatpush1.msra.mxu0 0.0
    %619 = vmatprep.subr.mxu0 0.0
    %620 = vmatpush1.msra.mxu0 0.0
    %621 = vmatprep.subr.mxu0 0.0
    %622 = vmatpush1.msra.mxu0 0.0
    %623 = vmatprep.subr.mxu0 0.0
    %624 = vmatpush1.msra.mxu0 0.0
    %625 = vmatprep.subr.mxu0 0.0
    %626 = vmatpush1.msra.mxu0 0.0
    %627 = vmatprep.subr.mxu0 0.0
    %628 = vmatpush1.msra.mxu0 0.0
    %629 = vmatprep.subr.mxu0 0.0
    %630 = vmatpush1.msra.mxu0 0.0
    %631 = vmatprep.subr.mxu0 0.0
    %632 = vmatpush1.msra.mxu0 0.0
    %633 = vmatprep.subr.mxu0 0.0
    %634 = vmatpush1.msra.mxu0 0.0
    %635 = vmatprep.subr.mxu0 0.0
    %636 = vmatpush1.msra.mxu0 0.0
    %637 = vmatprep.subr.mxu0 0.0
    %638 = vmatpush1.msra.mxu0 0.0
    %639 = vmatprep.mubr.f32.mxu0 0.0
    %v640 = vand.u32 %v75, 4294901760
    %641 = vmatmul.mubr.f32.gmra.mrb[0].mxu0 %v640
    %v642 = vpop.f32.mrb[0].mxu0
    %v643 = vadd.f32 %v524, %v642
    %v644 = vpop.f32.mrb[0].mxu0
    %645 = vdwg.mxu0
    %646 = vmatprep.subr.mxu0 0.0
    %v647 = vand.u32 %v76, 4294901760
    %648 = vmatpush1.msra.mxu0 %v647
    %649 = vmatprep.subr.mxu0 0.0
    %v650 = vand.u32 %v77, 4294901760
    %651 = vmatpush1.msra.mxu0 %v650
    %652 = vmatprep.subr.mxu0 0.0
    %v653 = vand.u32 %v78, 4294901760
    %654 = vmatpush1.msra.mxu0 %v653
    %655 = vmatprep.subr.mxu0 0.0
    %v656 = vand.u32 %v79, 4294901760
    %657 = vmatpush1.msra.mxu0 %v656
    %658 = vmatprep.subr.mxu0 0.0
    %v659 = vand.u32 %v80, 4294901760
    %660 = vmatpush1.msra.mxu0 %v659
    %661 = vmatprep.subr.mxu0 0.0
    %v662 = vand.u32 %v81, 4294901760
    %663 = vmatpush1.msra.mxu0 %v662
    %664 = vmatprep.subr.mxu0 0.0
    %v665 = vand.u32 %v82, 4294901760
    %666 = vmatpush1.msra.mxu0 %v665
    %667 = vmatprep.subr.mxu0 0.0
    %v668 = vand.u32 %v83, 4294901760
    %669 = vmatpush1.msra.mxu0 %v668
    %670 = vmatprep.subr.mxu0 0.0
    %v671 = vand.u32 %v84, 4294901760
    %672 = vmatpush1.msra.mxu0 %v671
    %673 = vmatprep.subr.mxu0 0.0
    %v674 = vand.u32 %v85, 4294901760
    %675 = vmatpush1.msra.mxu0 %v674
    %676 = vmatprep.subr.mxu0 0.0
    %v677 = vand.u32 %v86, 4294901760
    %678 = vmatpush1.msra.mxu0 %v677
    %679 = vmatprep.subr.mxu0 0.0
    %v680 = vand.u32 %v87, 4294901760
    %681 = vmatpush1.msra.mxu0 %v680
    %682 = vmatprep.subr.mxu0 0.0
    %v683 = vand.u32 %v88, 4294901760
    %684 = vmatpush1.msra.mxu0 %v683
    %685 = vmatprep.subr.mxu0 0.0
    %v686 = vand.u32 %v89, 4294901760
    %687 = vmatpush1.msra.mxu0 %v686
    %688 = vmatprep.subr.mxu0 0.0
    %v689 = vand.u32 %v90, 4294901760
    %690 = vmatpush1.msra.mxu0 %v689
    %691 = vmatprep.subr.mxu0 0.0
    %v692 = vand.u32 %v91, 4294901760
    %693 = vmatpush1.msra.mxu0 %v692
    %694 = vmatprep.subr.mxu0 0.0
    %695 = vmatpush1.msra.mxu0 0.0
    %696 = vmatprep.subr.mxu0 0.0
    %697 = vmatpush1.msra.mxu0 0.0
    %698 = vmatprep.subr.mxu0 0.0
    %699 = vmatpush1.msra.mxu0 0.0
    %700 = vmatprep.subr.mxu0 0.0
    %701 = vmatpush1.msra.mxu0 0.0
    %702 = vmatprep.subr.mxu0 0.0
    %703 = vmatpush1.msra.mxu0 0.0
    %704 = vmatprep.subr.mxu0 0.0
    %705 = vmatpush1.msra.mxu0 0.0
    %706 = vmatprep.subr.mxu0 0.0
    %707 = vmatpush1.msra.mxu0 0.0
    %708 = vmatprep.subr.mxu0 0.0
    %709 = vmatpush1.msra.mxu0 0.0
    %710 = vmatprep.subr.mxu0 0.0
    %711 = vmatpush1.msra.mxu0 0.0
    %712 = vmatprep.subr.mxu0 0.0
    %713 = vmatpush1.msra.mxu0 0.0
    %714 = vmatprep.subr.mxu0 0.0
    %715 = vmatpush1.msra.mxu0 0.0
    %716 = vmatprep.subr.mxu0 0.0
    %717 = vmatpush1.msra.mxu0 0.0
    %718 = vmatprep.subr.mxu0 0.0
    %719 = vmatpush1.msra.mxu0 0.0
    %720 = vmatprep.subr.mxu0 0.0
    %721 = vmatpush1.msra.mxu0 0.0
    %722 = vmatprep.subr.mxu0 0.0
    %723 = vmatpush1.msra.mxu0 0.0
    %724 = vmatprep.subr.mxu0 0.0
    %725 = vmatpush1.msra.mxu0 0.0
    %726 = vmatprep.mubr.f32.mxu0 0.0
    %v727 = vand.u32 %v75, 4294901760
    %728 = vmatmul.mubr.f32.gmra.mrb[0].mxu0 %v727
    %v729 = vpop.f32.mrb[0].mxu0
    %v730 = vadd.f32 %v643, %v729
    %v731 = vpop.f32.mrb[0].mxu0
    %732 = vdwg.mxu0
    %v733 = vmax.f32 %v730, 1e-30
    %v734 = vlog2.pop %v733
    %v735 = vmul.f32 %v734, 0.6931472
    %v736 = vsub.f32 %v73, %v735
    %v737 = vrcp.pop %v733
    %v738 = vmul.f32 %v733, %v737
    %v739 = vsub.f32 2.0, %v738
    %v740 = vmul.f32 %v737, %v739
    %v741 = vmul.f32 %v733, %v740
    %v742 = vsub.f32 2.0, %v741
    %v743 = vmul.f32 %v740, %v742
    %v744 = vmul.f32 %v75, %v743
    %v745 = vmin.f32 %v744, 1.0
    %v746 = vsub.f32 0.0, %v69
    %v747 = vmul.f32 %v746, %v736
    %v748 = vsub.f32 1.0, %v745
    %v749 = vmax.f32 %v748, 0.0
    %v750 = vmul.f32 %v749, %v749
    %v751 = vmul.f32 %v747, %v750
    %v753 = vlaneseq
    %v754 = vshrl.u32 %v753, 7
    %v755 = vsub.s32 0, %v754
    %v756 = vrot.slane %v70, %v755
    %v758 = vmul.f32 %v751, %v756
    %v759 = vld [vmem:[#allocation2] sm:$0xff]
    %v760 = vadd.f32 %v759, %v758
    %761 = vst [vmem:[#allocation2] sm:$0xff] %v760
    // Predicated region
    $region34: #{tpu_custom_call.1} parent=1 // pred_check
      %p762 = pneg %p63
    $region35: #{tpu_custom_call.1} parent=1 // pred_check_branch
      %764 = sbr.rel (%p762) target = $region37
    $region36: #{tpu_custom_call.1} parent=1 // pred_region
      %v765 = vld [vmem:[#allocation2] sm:$0xff]
      %766 = vadd.xlane.f32.xlu0 %v765
      %v767 = vpop.xlane.xlu0 %766
      %v768 = vrot.slane %v767, 4
      %v769 = vadd.f32 %v767, %v768
      %v770 = vrot.slane %v769, 2
      %v771 = vadd.f32 %v769, %v770
      %v772 = vrot.slane %v771, 1
      %v773 = vadd.f32 %v771, %v772
      %s774 = vtos %v773
      %v775 = vstv %s774
      %776 = vst [vmem:[#allocation9] sm:$0xff] %v775
    $region37: #{tpu_custom_call.1} parent=1 // pred_fallthru
      _
    // Predicated region
    $region38: #{tpu_custom_call.1} parent=1 // pred_check
      _
    $region39: #{tpu_custom_call.1} parent=1 // pred_check_branch
      %778 = sbr.rel (0) target = $region41
    $region40: #{tpu_custom_call.1} parent=1 // pred_region
      %s780 = ssub.s32 128, 128
      %781 = vsyncadd [#allocation5], %s780
      %s783 = sshll.u32 [#allocation9], 4
      %s784 = int_to_ptr.vmem [resolvable:$true] %s783
      %786 = dma.vmem_to_hbm [thread:$0]  %s784, 128, %s4, [#allocation5]
    $region41: #{tpu_custom_call.1} parent=1 // pred_fallthru
      _
    // Predicated region
    $region42: #{tpu_custom_call.1} parent=1 // pred_check
      _
    $region43: #{tpu_custom_call.1} parent=1 // pred_check_branch
      %788 = sbr.rel (0) target = $region45
    $region44: #{tpu_custom_call.1} parent=1 // pred_region
      %789 = dma.done [#allocation5], 128
    $region45: #{tpu_custom_call.1} parent=1 // pred_fallthru
      _
    %790 = vsyncpa [#allocation4], 1
    %791 = vsyncpa [#allocation7], 1
    %792 = vsyncpa [#allocation5], 1

</llo_original>
